<compile_context>
chip_gen: v7x
topology: tpu7x:2x2x1
jax: 0.10.0
libtpu: 0.0.40
codegen_flags: <defaults>
</compile_context>

<pallas_src>
import jax
import jax.numpy as jnp
import numpy as np
from jax.experimental import pallas as pl
from jax.experimental.pallas import tpu as pltpu


def pom_kernel(x_ref, w_ref, mb_ref, o_ref):
    # x_ref : (TB, U)   current batch tile of inputs
    # w_ref : (1, U)    f(x) weight, resident across the whole grid
    # mb_ref: (K, 1)    cumulative sum of squared biases, resident
    # o_ref : (K, TB)   lane-dense output tile (batch -> lanes)
    #
    # f(x) on the VPU/XLU: a (TB,U)@(U,1) matmul would use a single MXU column.
    fx = jnp.sum(x_ref[...] * w_ref[...], axis=-1)          # (TB,)
    z = mb_ref[...] + fx[None, :]                           # (K,1)+(1,TB) -> (K,TB)
    o_ref[...] = jax.nn.sigmoid(z).astype(o_ref.dtype)


def pom_forward(x, w_fx, biases, *, tb_max=1024):
    """POM forward: sigmoid(x @ w_fx.T + cumsum(biases**2, axis=1)). Returns (B, K)."""
    B, U = x.shape
    K = biases.shape[1]

    x = x.astype(jnp.float32)
    w = w_fx.reshape(1, U).astype(jnp.float32)
    # Batch-independent bias term: (biases**2) @ uro  ==  cumulative sum along K.
    mb = jnp.cumsum(biases.astype(jnp.float32) ** 2, axis=1).reshape(K, 1)

    # Batch tile: whole batch if small, otherwise a lane-aligned multiple of 128.
    if B <= tb_max:
        tb = B
    else:
        tb = max(128, (tb_max // 128) * 128)
    grid = (pl.cdiv(B, tb),)

    # VMEM budget: double-buffered x tile + output tile + small resident operands.
    vmem_bytes = 2 * tb * U * 4 + 2 * K * tb * 4 + 2 * (U * 4 + K * 4) + (2 << 20)
    vmem_bytes = int(min(max(vmem_bytes, 8 << 20), 64 << 20))

    out_t = pl.pallas_call(
        pom_kernel,
        out_shape=jax.ShapeDtypeStruct((K, B), jnp.float32),
        grid=grid,
        in_specs=[
            pl.BlockSpec((tb, U), lambda i: (i, 0)),      # x: tiled over batch
            pl.BlockSpec((1, U), lambda i: (0, 0)),       # w: resident
            pl.BlockSpec((K, 1), lambda i: (0, 0)),       # mb: resident
        ],
        out_specs=pl.BlockSpec((K, tb), lambda i: (0, i)),  # lane-dense (K, B)
        compiler_params=pltpu.CompilerParams(
            dimension_semantics=("parallel",),
            vmem_limit_bytes=vmem_bytes,
        ),
    )(x, w, mb)

    # Back to the PyTorch (B, K) layout.
    return out_t.T


def make_pom_params(num_units, num_classes, key):
    """Parameter init mirroring POM.__init__ shapes (torch layouts)."""
    K = num_classes - 1
    # l_fx weight: torch shape (1, num_units).
    w_fx = jax.random.normal(key, (1, num_units), dtype=jnp.float32) * 0.1
    # biases: linspace(-1, -1, K) -> all -1, shape (1, K).
    biases = jnp.full((1, K), -1.0, dtype=jnp.float32)
    # uro (after the transpose in __init__): uro[i, j] = 1 if i <= j.
    uro_np = np.zeros((K, K), dtype=np.float32)
    for k in range(K):
        uro_np[k, 0:k + 1] = 1.0
    uro = jnp.asarray(uro_np.T)
    return w_fx, biases, uro


def pom_reference(x, w_fx, biases, uro):
    """Pure-JAX reference of the PyTorch forward (uses the explicit uro matmul)."""
    fx = x @ w_fx.T                   # (B, 1)
    mb = (biases ** 2) @ uro          # (1, K)
    return jax.nn.sigmoid(fx + mb)    # (B, K)


if __name__ == "__main__":
    key = jax.random.PRNGKey(0)
    k1, k2, k3, k4 = jax.random.split(key, 4)

    # Small case matching the module's intent (num_classes=5 -> K=4 output units).
    B, U, C = 4, 32, 5
    x = jax.random.normal(k1, (B, U), dtype=jnp.float32)
    w_fx, biases, uro = make_pom_params(U, C, k2)
    out = jax.block_until_ready(pom_forward(x, w_fx, biases))
    ref = pom_reference(x, w_fx, biases, uro)
    np.testing.assert_allclose(np.asarray(out), np.asarray(ref), rtol=1e-5, atol=1e-5)

    # Tiled case: exercises the batch grid (4 steps) with resident w / m_biases.
    B2, U2, C2 = 512, 256, 9
    x2 = jax.random.normal(k3, (B2, U2), dtype=jnp.float32)
    w2, b2, uro2 = make_pom_params(U2, C2, k4)
    out2 = jax.block_until_ready(pom_forward(x2, w2, b2, tb_max=128))
    ref2 = pom_reference(x2, w2, b2, uro2)
    np.testing.assert_allclose(np.asarray(out2), np.asarray(ref2), rtol=1e-5, atol=1e-5)

    print("KERNEL_OK")
</pallas_src>

<mosaic_0001>
module attributes {stable_mosaic.version = 11 : i64} {
  func.func @pom_kernel(%arg0: i32, %arg1: memref<4x32xf32, #tpu.memory_space<vmem>>, %arg2: memref<1x32xf32, #tpu.memory_space<vmem>>, %arg3: memref<4x1xf32, #tpu.memory_space<vmem>>, %arg4: memref<4x4xf32, #tpu.memory_space<vmem>>) attributes {dimension_semantics = [#tpu.dimension_semantics<parallel>], iteration_bounds = array<i64: 1>, scalar_prefetch = 0 : i64, scratch_operands = 0 : i64, tpu.core_type = #tpu.core_type<tc>, window_params = [{transform_indices = @transform_0, window_bounds = array<i64: 4, 32>}, {pipeline_mode = #tpu.pipeline_mode<synchronous>, transform_indices = @transform_1, window_bounds = array<i64: 1, 32>}, {pipeline_mode = #tpu.pipeline_mode<synchronous>, transform_indices = @transform_2, window_bounds = array<i64: 4, 1>}, {transform_indices = @transform_3, window_bounds = array<i64: 4, 4>}]} {
    %c0 = arith.constant 0 : index
    %c0_0 = arith.constant 0 : index
    %0 = vector.load %arg1[%c0, %c0_0] : memref<4x32xf32, #tpu.memory_space<vmem>>, vector<4x32xf32>
    %c0_1 = arith.constant 0 : index
    %c0_2 = arith.constant 0 : index
    %1 = vector.load %arg2[%c0_1, %c0_2] : memref<1x32xf32, #tpu.memory_space<vmem>>, vector<1x32xf32>
    %2 = vector.broadcast %1 : vector<1x32xf32> to vector<4x32xf32>
    %3 = arith.mulf %0, %2 : vector<4x32xf32>
    %cst = arith.constant dense<0.000000e+00> : vector<4xf32>
    %4 = vector.multi_reduction <add>, %3, %cst [1] : vector<4x32xf32> to vector<4xf32>
    %c0_3 = arith.constant 0 : index
    %c0_4 = arith.constant 0 : index
    %5 = vector.load %arg3[%c0_3, %c0_4] : memref<4x1xf32, #tpu.memory_space<vmem>>, vector<4x1xf32>
    %6 = vector.shape_cast %4 : vector<4xf32> to vector<1x4xf32>
    %7 = vector.broadcast %5 : vector<4x1xf32> to vector<4x4xf32>
    %8 = vector.broadcast %6 : vector<1x4xf32> to vector<4x4xf32>
    %9 = arith.addf %7, %8 : vector<4x4xf32>
    %10 = arith.negf %9 : vector<4x4xf32>
    %11 = math.exp %10 : vector<4x4xf32>
    %cst_5 = arith.constant 1.000000e+00 : f32
    %12 = vector.broadcast %cst_5 : f32 to vector<4x4xf32>
    %13 = arith.addf %12, %11 : vector<4x4xf32>
    %14 = arith.divf %12, %13 : vector<4x4xf32>
    %c0_6 = arith.constant 0 : index
    %c0_7 = arith.constant 0 : index
    %15 = vector.load %arg4[%c0_6, %c0_7] : memref<4x4xf32, #tpu.memory_space<vmem>>, vector<4x4xf32>
    tpu.vector_store %arg4[%c0_6, %c0_7], %14 {strides = array<i32>} : memref<4x4xf32, #tpu.memory_space<vmem>>, vector<4x4xf32>,
    return
  }
  func.func @transform_0(%arg0: i32) -> (i32, i32) {
    %c0_i32 = arith.constant 0 : i32
    %c0_i32_0 = arith.constant 0 : i32
    return %arg0, %c0_i32 : i32, i32
  }
  func.func @transform_1(%arg0: i32) -> (i32, i32) {
    %c0_i32 = arith.constant 0 : i32
    %c0_i32_0 = arith.constant 0 : i32
    %c0_i32_1 = arith.constant 0 : i32
    return %c0_i32, %c0_i32_0 : i32, i32
  }
  func.func @transform_2(%arg0: i32) -> (i32, i32) {
    %c0_i32 = arith.constant 0 : i32
    %c0_i32_0 = arith.constant 0 : i32
    %c0_i32_1 = arith.constant 0 : i32
    return %c0_i32, %c0_i32_0 : i32, i32
  }
  func.func @transform_3(%arg0: i32) -> (i32, i32) {
    %c0_i32 = arith.constant 0 : i32
    %c0_i32_0 = arith.constant 0 : i32
    return %c0_i32, %arg0 : i32, i32
  }
}

</mosaic_0001>

<llo_original>
// kernel: tpu_custom_call.1
$region0: #{tpu_custom_call.1}
  #allocation0 [shape = 'u32[]', space=smem, size = 0x4, offset = 0x4, fixed_abs, tag = 'smem constant byte address 0x4 - core index']
  #allocation1 [shape = 'u32[144,128]{1,0:T(1,128)}', space=vmem, size = 0x12000, scoped, tag = 'internal scratch']
  %s0 = inlined_call_operand.vmem [shape: f32[4,32], index: 0, kind: input, shape index: {}]
  %s1 = inlined_call_operand.vmem [shape: f32[1,32], index: 1, kind: input, shape index: {}]
  %s2 = inlined_call_operand.vmem [shape: f32[4,1], index: 2, kind: input, shape index: {}]
  %s3 = inlined_call_operand.hbm [shape: f32[4,4], index: 3, kind: output, shape index: {}]
  %s4 = sld [smem:[#allocation0]]
  $region22: #{tpu_custom_call.1} parent=0
    _
  %s6 = ssub.s32 1, %s4
  %s7 = scalar_select 0, %s6, %s4
  $region1: #{tpu_custom_call.1} parent=0
    #allocation2 [shape = 'u8[2048]{0}', space=vmem, size = 0x800, scoped, tag = 'output window, operand 0, single buffered']
    #allocation3 [shape = 's32[1]{0}', space=sflag, size = 0x4, scoped, tag = 'scoped memory for tpu_custom_call.1']
    %8 = vsyncpa [#allocation3], 0
    // Predicated region
    $region2: #{tpu_custom_call.1} parent=1 // pred_check
      _
    $region3: #{tpu_custom_call.1} parent=1 // pred_check_branch
      %10 = sbr.rel (0) target = $region5
    $region4: #{tpu_custom_call.1} parent=1 // pred_region
      _
    $region5: #{tpu_custom_call.1} parent=1 // pred_fallthru
      _
    // Predicated region
    $region6: #{tpu_custom_call.1} parent=1 // pred_check
      _
    $region7: #{tpu_custom_call.1} parent=1 // pred_check_branch
      %12 = sbr.rel (0) target = $region9
    $region8: #{tpu_custom_call.1} parent=1 // pred_region
      _
    $region9: #{tpu_custom_call.1} parent=1 // pred_fallthru
      _
    // Predicated region
    $region10: #{tpu_custom_call.1} parent=1 // pred_check
      _
    $region11: #{tpu_custom_call.1} parent=1 // pred_check_branch
      %14 = sbr.rel (0) target = $region13
    $region12: #{tpu_custom_call.1} parent=1 // pred_region
      _
    $region13: #{tpu_custom_call.1} parent=1 // pred_fallthru
      _
    %v15 = vld [vmem:[%s0] sm:$0xf]
    %v16 = vld [vmem:[%s1] sm:$0x1]
    %v18 = vlaneseq
    %v19 = vshrl.u32 %v18, 7
    %v20 = vsub.s32 0, %v19
    %v21 = vrot.slane %v16, %v20
    %v23 = vmul.f32 %v15, %v21
    %vm24 = vcmask 257024
    %v25 = vsel %vm24, %v23, 0.0
    %26 = vadd.xlane.f32.xlu0 %v25
    %v27 = vpop.xlane.xlu0 %26
    %v28 = vld [vmem:[%s2] sm:$0xf]
    %30 = vset.pattern.permute.xlu0 0
    %31 = vperm.xlu0 %30, %v28
    %v32 = vpop.permute.xlu0 %31
    %v35 = vlaneseq
    %v36 = vand.u32 %v35, 127
    %v37 = vlaneseq
    %v38 = vshrl.u32 %v37, 7
    %v39 = vsub.s32 %v36, %v38
    %v40 = vrot.slane %v27, %v39
    %vm41 = vcmask 1042434
    %v42 = vsel %vm41, %v40, %v40
    %vm43 = vcmask 1043459
    %v44 = vsel %vm43, %v40, %v42
    %v46 = vadd.f32 %v32, %v44
    %v47 = vxor.u32 %v46, 2147483648
    %v48 = vmul.f32 %v47, 1.442695
    %v49 = vpow.pop %v48
    %v50 = vadd.f32 %v49, 1.0
    %v51 = vrcp.pop %v50
    %v52 = vmul.f32 1.0, %v51
    %vm53 = vcmask 27648
    %54 = vst.msk [vmem:[#allocation2] sm:$0xf] %vm53, %v52
    // Predicated region
    $region14: #{tpu_custom_call.1} parent=1 // pred_check
      _
    $region15: #{tpu_custom_call.1} parent=1 // pred_check_branch
      %56 = sbr.rel (0) target = $region17
    $region16: #{tpu_custom_call.1} parent=1 // pred_region
      %s58 = ssub.s32 64, 64
      %59 = vsyncadd [#allocation3], %s58
      %s61 = sshll.u32 [#allocation2], 4
      %s62 = int_to_ptr.vmem [resolvable:$true] %s61
      %64 = dma.vmem_to_hbm [thread:$0]  %s62, 64, %s3, [#allocation3]
    $region17: #{tpu_custom_call.1} parent=1 // pred_fallthru
      _
    // Predicated region
    $region18: #{tpu_custom_call.1} parent=1 // pred_check
      _
    $region19: #{tpu_custom_call.1} parent=1 // pred_check_branch
      %66 = sbr.rel (0) target = $region21
    $region20: #{tpu_custom_call.1} parent=1 // pred_region
      %67 = dma.done [#allocation3], 64
    $region21: #{tpu_custom_call.1} parent=1 // pred_fallthru
      _
    %68 = vsyncpa [#allocation3], 1

</llo_original>
